<compile_context>
chip_gen: v7x
topology: tpu7x:2x2x1
jax: 0.10.0
libtpu: 0.0.40
codegen_flags: <defaults>
</compile_context>

<pallas_src>
import functools

import jax
import jax.numpy as jnp
from jax.experimental import pallas as pl
from jax.experimental.pallas import tpu as pltpu


def _linear_kernel(x_ref, w_ref, b_ref, o_ref):
    # x_ref: [tm, c_in]   w_ref: [c_in, c_out]   b_ref: [1, c_out]   o_ref: [tm, c_out]
    y = jnp.dot(x_ref[...], w_ref[...], preferred_element_type=jnp.float32)
    o_ref[...] = (y + b_ref[...]).astype(o_ref.dtype)


def template_pair_embedder(x, weight, bias, *, tile_m=512,
                           out_dtype=None,
                           vmem_limit_bytes=64 * 1024 * 1024):
    """Applies y = x @ weight + bias over the last dim of x.

    x:      [..., c_in]
    weight: [c_in, c_out]   (pre-transposed from PyTorch's [out, in])
    bias:   [1, c_out]
    """
    c_in = x.shape[-1]
    c_out = weight.shape[-1]
    lead_shape = x.shape[:-1]
    out_dtype = out_dtype if out_dtype is not None else x.dtype

    x2 = x.reshape(-1, c_in)
    m_rows = x2.shape[0]

    if m_rows <= tile_m:
        tm = m_rows            # single block == full dim, always layout-legal
        m_pad = m_rows
    else:
        tm = max(8, (tile_m // 8) * 8)   # sublane-aligned row tile
        m_pad = pl.cdiv(m_rows, tm) * tm
        if m_pad != m_rows:
            x2 = jnp.pad(x2, ((0, m_pad - m_rows), (0, 0)))

    grid = (m_pad // tm,)

    out = pl.pallas_call(
        _linear_kernel,
        out_shape=jax.ShapeDtypeStruct((m_pad, c_out), out_dtype),
        grid_spec=pltpu.PrefetchScalarGridSpec(
            num_scalar_prefetch=0,
            grid=grid,
            in_specs=[
                pl.BlockSpec((tm, c_in), lambda i: (i, 0)),        # row tile of x
                pl.BlockSpec((c_in, c_out), lambda i: (0, 0)),     # resident weight
                pl.BlockSpec((1, c_out), lambda i: (0, 0)),        # resident bias
            ],
            out_specs=pl.BlockSpec((tm, c_out), lambda i: (i, 0)),
        ),
        compiler_params=pltpu.CompilerParams(
            dimension_semantics=("parallel",),
            vmem_limit_bytes=vmem_limit_bytes,
        ),
    )(x2, weight, bias)

    if m_pad != m_rows:
        out = out[:m_rows]
    return out.reshape(*lead_shape, c_out)


def reference(x, weight, bias):
    """Pure-JAX reference mirroring the PyTorch forward exactly."""
    return x @ weight + bias[0]


if __name__ == "__main__":
    # Small shapes consistent with the module: template pair features
    # [n_templ, N_res, N_res, c_in] with OpenFold's c_in=88, c_t(c_out)=64.
    n_templ, n_res = 2, 16
    c_in, c_out = 88, 64

    key = jax.random.PRNGKey(0)
    kx, kw = jax.random.split(key)

    x = jax.random.normal(kx, (n_templ, n_res, n_res, c_in), dtype=jnp.float32)
    # init='relu' (He / trunc-normal) approximated with a scaled normal; bias zero-init
    # as in the PyTorch Linear wrapper. Stored pre-transposed as [c_in, c_out].
    weight = (jax.random.normal(kw, (c_in, c_out), dtype=jnp.float32)
              * jnp.sqrt(jnp.float32(2.0 / c_in)))
    bias = jnp.zeros((1, c_out), jnp.float32)

    # tile_m=128 exercises a multi-step (4-step) pipelined grid at this toy size.
    y = template_pair_embedder(x, weight, bias, tile_m=128)
    y = jax.block_until_ready(y)

    y_ref = reference(x, weight, bias)

    assert y.shape == (n_templ, n_res, n_res, c_out)
    assert jnp.allclose(y, y_ref, atol=2e-3, rtol=2e-3), "TemplatePairEmbedder mismatch"

    print("KERNEL_OK")
</pallas_src>

<mosaic_0001>
module attributes {stable_mosaic.version = 11 : i64} {
  func.func @_linear_kernel(%arg0: i32, %arg1: memref<128x88xf32, #tpu.memory_space<vmem>>, %arg2: memref<88x64xf32, #tpu.memory_space<vmem>>, %arg3: memref<1x64xf32, #tpu.memory_space<vmem>>, %arg4: memref<128x64xf32, #tpu.memory_space<vmem>>) attributes {dimension_semantics = [#tpu.dimension_semantics<parallel>], iteration_bounds = array<i64: 4>, scalar_prefetch = 0 : i64, scratch_operands = 0 : i64, tpu.core_type = #tpu.core_type<tc>, window_params = [{transform_indices = @transform_0, window_bounds = array<i64: 128, 88>}, {pipeline_mode = #tpu.pipeline_mode<synchronous>, transform_indices = @transform_1, window_bounds = array<i64: 88, 64>}, {pipeline_mode = #tpu.pipeline_mode<synchronous>, transform_indices = @transform_2, window_bounds = array<i64: 1, 64>}, {transform_indices = @transform_3, window_bounds = array<i64: 128, 64>}]} {
    %c0 = arith.constant 0 : index
    %c0_0 = arith.constant 0 : index
    %0 = vector.load %arg1[%c0, %c0_0] : memref<128x88xf32, #tpu.memory_space<vmem>>, vector<128x88xf32>
    %c0_1 = arith.constant 0 : index
    %c0_2 = arith.constant 0 : index
    %1 = vector.load %arg2[%c0_1, %c0_2] : memref<88x64xf32, #tpu.memory_space<vmem>>, vector<88x64xf32>
    %cst = arith.constant dense<0.000000e+00> : vector<128x64xf32>
    %2 = tpu.matmul %0, %1, %cst {dimension_numbers = #tpu.dot_dimension_numbers<[1], [0], [0], [1], [0, 0, 1, 1], [], []>} : vector<128x88xf32>, vector<88x64xf32>, vector<128x64xf32> -> vector<128x64xf32>
    %c0_3 = arith.constant 0 : index
    %c0_4 = arith.constant 0 : index
    %3 = vector.load %arg3[%c0_3, %c0_4] : memref<1x64xf32, #tpu.memory_space<vmem>>, vector<1x64xf32>
    %4 = vector.broadcast %3 : vector<1x64xf32> to vector<128x64xf32>
    %5 = arith.addf %2, %4 : vector<128x64xf32>
    %c0_5 = arith.constant 0 : index
    %c0_6 = arith.constant 0 : index
    %6 = vector.load %arg4[%c0_5, %c0_6] : memref<128x64xf32, #tpu.memory_space<vmem>>, vector<128x64xf32>
    tpu.vector_store %arg4[%c0_5, %c0_6], %5 {strides = array<i32>} : memref<128x64xf32, #tpu.memory_space<vmem>>, vector<128x64xf32>,
    return
  }
  func.func @transform_0(%arg0: i32) -> (i32, i32) {
    %c0_i32 = arith.constant 0 : i32
    %c0_i32_0 = arith.constant 0 : i32
    return %arg0, %c0_i32 : i32, i32
  }
  func.func @transform_1(%arg0: i32) -> (i32, i32) {
    %c0_i32 = arith.constant 0 : i32
    %c0_i32_0 = arith.constant 0 : i32
    %c0_i32_1 = arith.constant 0 : i32
    return %c0_i32, %c0_i32_0 : i32, i32
  }
  func.func @transform_2(%arg0: i32) -> (i32, i32) {
    %c0_i32 = arith.constant 0 : i32
    %c0_i32_0 = arith.constant 0 : i32
    %c0_i32_1 = arith.constant 0 : i32
    return %c0_i32, %c0_i32_0 : i32, i32
  }
  func.func @transform_3(%arg0: i32) -> (i32, i32) {
    %c0_i32 = arith.constant 0 : i32
    %c0_i32_0 = arith.constant 0 : i32
    return %arg0, %c0_i32 : i32, i32
  }
}

</mosaic_0001>

<llo_original>
// kernel: tpu_custom_call.1
$region0: #{tpu_custom_call.1}
  #allocation0 [shape = 'u32[]', space=smem, size = 0x4, offset = 0x4, fixed_abs, tag = 'smem constant byte address 0x4 - core index']
  #allocation1 [shape = 'u32[144,128]{1,0:T(1,128)}', space=vmem, size = 0x12000, scoped, tag = 'internal scratch']
  %s0 = inlined_call_operand.hbm [shape: f32[512,88], index: 0, kind: input, shape index: {}]
  %s1 = inlined_call_operand.hbm [shape: f32[88,64], index: 1, kind: input, shape index: {}]
  %s2 = inlined_call_operand.hbm [shape: f32[1,64], index: 2, kind: input, shape index: {}]
  %s3 = inlined_call_operand.hbm [shape: f32[512,64], index: 3, kind: output, shape index: {}]
  %s4 = sld [smem:[#allocation0]]
  $region57: #{tpu_custom_call.1} parent=0
    _
  %s6 = ssub.s32 1, %s4
  %s7 = scalar_select 0, %s6, %s4
  $region1: #{tpu_custom_call.1} parent=0
    #allocation2 [shape = 'u8[131072]{0}', space=vmem, size = 0x20000, scoped, tag = 'input window, operand 0']
    #allocation3 [shape = 's32[2]{0}', space=sflag, size = 0x8, scoped, tag = 'scoped memory for tpu_custom_call.1']
    #allocation4 [shape = 's32[2]{0}', space=sflag, size = 0x8, scoped, tag = 'scoped memory for tpu_custom_call.1']
    #allocation5 [shape = 'u8[45056]{0}', space=vmem, size = 0xb000, scoped, tag = 'input window, operand 1, single buffered']
    #allocation6 [shape = 's32[1]{0}', space=sflag, size = 0x4, scoped, tag = 'scoped memory for tpu_custom_call.1']
    #allocation7 [shape = 'u8[512]{0}', space=vmem, size = 0x400, scoped, tag = 'input window, operand 2, single buffered']
    #allocation8 [shape = 'u8[131072]{0}', space=vmem, size = 0x20000, scoped, tag = 'output window, operand 0']
    %8 = vsyncpa [#allocation3], 0
    %s9 = scalar_lea.sflag [#allocation3], 1
    %10 = vsyncpa %s9, 0
    %11 = vsyncpa [#allocation6], 0
    %12 = vsyncpa [#allocation4], 0
    %s13 = scalar_lea.sflag [#allocation4], 1
    %14 = vsyncpa %s13, 0
    loop: start=0, step=1, limit=6
    $region2: #{tpu_custom_call.1} parent=1 // loop_pre_header
      _
    $region3: #{tpu_custom_call.1} parent=1 // loop_header
      %s16 = sphi 0, %s20
      %p17 = scmp.ge.s32.totalorder %s16, 6
      %s26 = sphi 0, %s28
      %s29 = sphi 0, %s26
      %s30 = sphi 0, %s29
      %s46 = sphi 0, %s30
      %s50 = sphi 0, %s50
      %s52 = sphi 0, %s50
      %s53 = sphi 0, %s52
      %s67 = sphi 0, %s53
      %s71 = sphi 0, %s71
      %s73 = sphi 0, %s71
      %s74 = sphi 0, %s73
      %s88 = sphi 0, %s74
      %s94 = sphi 0, %s96
      %s97 = sphi 0, %s94
      %s98 = sphi 0, %s97
      %s114 = sphi 0, %s98
    $region4: #{tpu_custom_call.1} parent=1 // loop_header_branch
      %19 = sbr.rel (%p17) target = $region8
    $region5: #{tpu_custom_call.1} parent=1 // loop_body
      %s21 = ssub.s32 %s16, 1
      %s22 = ssub.s32 %s16, 2
      %s23 = sadd.s32 %s16, 1
      %s24 = ssub.s32 %s16, %s23
      %p25 = scmp.eq.s32.totalorder %s24, 0
      %s27 = sadd.s32 %s26, 1
      %s28 = scalar_select %p25, %s26, %s27
      %p31 = pneg %p25
      %p32 = scmp.eq.s32.totalorder %s16, 3
      %p33 = por %p31, %p32
      %p34 = scmp.ne.s32.totalorder %s26, %s29
      %p35 = scmp.eq.s32.totalorder %s16, 0
      %p36 = por %p34, %p35
      %p37 = scmp.ne.s32.totalorder %s26, %s29
      %p38 = scmp.eq.s32.totalorder %s21, 3
      %p39 = por %p37, %p38
      %p40 = scmp.ne.s32.totalorder %s29, %s30
      %p41 = scmp.eq.s32.totalorder %s21, 0
      %p42 = por %p40, %p41
      %p43 = scmp.ne.s32.totalorder %s29, %s30
      %p44 = scmp.eq.s32.totalorder %s22, 3
      %p45 = por %p43, %p44
      %p47 = scmp.ne.s32.totalorder %s30, %s46
      %p48 = scmp.eq.s32.totalorder %s22, 0
      %p49 = por %p47, %p48
      %s51 = sadd.s32 %s50, 1
      %p54 = scmp.eq.s32.totalorder %s16, 3
      %p55 = scmp.ne.s32.totalorder %s50, %s52
      %p56 = scmp.eq.s32.totalorder %s16, 0
      %p57 = por %p55, %p56
      %p58 = scmp.ne.s32.totalorder %s50, %s52
      %p59 = scmp.eq.s32.totalorder %s21, 3
      %p60 = por %p58, %p59
      %p61 = scmp.ne.s32.totalorder %s52, %s53
      %p62 = scmp.eq.s32.totalorder %s21, 0
      %p63 = por %p61, %p62
      %p64 = scmp.ne.s32.totalorder %s52, %s53
      %p65 = scmp.eq.s32.totalorder %s22, 3
      %p66 = por %p64, %p65
      %p68 = scmp.ne.s32.totalorder %s53, %s67
      %p69 = scmp.eq.s32.totalorder %s22, 0
      %p70 = por %p68, %p69
      %s72 = sadd.s32 %s71, 1
      %p75 = scmp.eq.s32.totalorder %s16, 3
      %p76 = scmp.ne.s32.totalorder %s71, %s73
      %p77 = scmp.eq.s32.totalorder %s16, 0
      %p78 = por %p76, %p77
      %p79 = scmp.ne.s32.totalorder %s71, %s73
      %p80 = scmp.eq.s32.totalorder %s21, 3
      %p81 = por %p79, %p80
      %p82 = scmp.ne.s32.totalorder %s73, %s74
      %p83 = scmp.eq.s32.totalorder %s21, 0
      %p84 = por %p82, %p83
      %p85 = scmp.ne.s32.totalorder %s73, %s74
      %p86 = scmp.eq.s32.totalorder %s22, 3
      %p87 = por %p85, %p86
      %p89 = scmp.ne.s32.totalorder %s74, %s88
      %p90 = scmp.eq.s32.totalorder %s22, 0
      %p91 = por %p89, %p90
      %s92 = ssub.s32 %s16, %s23
      %p93 = scmp.eq.s32.totalorder %s92, 0
      %s95 = sadd.s32 %s94, 1
      %s96 = scalar_select %p93, %s94, %s95
      %p99 = pneg %p93
      %p100 = scmp.eq.s32.totalorder %s16, 3
      %p101 = por %p99, %p100
      %p102 = scmp.ne.s32.totalorder %s94, %s97
      %p103 = scmp.eq.s32.totalorder %s16, 0
      %p104 = por %p102, %p103
      %p105 = scmp.ne.s32.totalorder %s94, %s97
      %p106 = scmp.eq.s32.totalorder %s21, 3
      %p107 = por %p105, %p106
      %p108 = scmp.ne.s32.totalorder %s97, %s98
      %p109 = scmp.eq.s32.totalorder %s21, 0
      %p110 = por %p108, %p109
      %p111 = scmp.ne.s32.totalorder %s97, %s98
      %p112 = scmp.eq.s32.totalorder %s22, 3
      %p113 = por %p111, %p112
      %p115 = scmp.ne.s32.totalorder %s98, %s114
      %p116 = scmp.eq.s32.totalorder %s22, 0
      %p117 = por %p115, %p116
      %p118 = scmp.le.s32.totalorder 1, %s16
      %p119 = scmp.lt.s32.totalorder %s16, 5
      %p120 = pnand %p118, %p119
      %p121 = pneg %p120
      // Predicated region
      $region9: #{tpu_custom_call.1} parent=5 // pred_check
        _
      $region10: #{tpu_custom_call.1} parent=5 // pred_check_branch
        %123 = sbr.rel (%p120) target = $region12
      $region11: #{tpu_custom_call.1} parent=5 // pred_region
        %s124 = ssub.s32 %s16, 1
        // Predicated region
        $region13: #{tpu_custom_call.1} parent=11 // pred_check
          %p125 = pneg %p63
        $region14: #{tpu_custom_call.1} parent=11 // pred_check_branch
          %127 = sbr.rel (%p125) target = $region16
        $region15: #{tpu_custom_call.1} parent=11 // pred_region
          %s129 = ssub.s32 1408, 1408
          %130 = vsyncadd [#allocation6], %s129
          %s131 = sshll.u32 [#allocation5], 4
          %s132 = int_to_ptr.vmem [resolvable:$true] %s131
          %137 = dma.hbm_to_vmem [thread:$0]  %s1, 1408, %s132, [#allocation6], 128, 128, 8
        $region16: #{tpu_custom_call.1} parent=11 // pred_fallthru
          _
        // Predicated region
        $region17: #{tpu_custom_call.1} parent=11 // pred_check
          %p138 = pneg %p84
        $region18: #{tpu_custom_call.1} parent=11 // pred_check_branch
          %140 = sbr.rel (%p138) target = $region20
        $region19: #{tpu_custom_call.1} parent=11 // pred_region
          %s142 = ssub.s32 16, 16
          %143 = vsyncadd [#allocation6], %s142
          %s145 = sshll.u32 [#allocation7], 4
          %s146 = int_to_ptr.vmem [resolvable:$true] %s145
          %148 = dma.hbm_to_vmem [thread:$0]  %s2, 16, %s146, [#allocation6]
        $region20: #{tpu_custom_call.1} parent=11 // pred_fallthru
          _
      $region12: #{tpu_custom_call.1} parent=5 // pred_fallthru
        _
      %p149 = scmp.lt.s32.totalorder %s16, 4
      // Predicated region
      $region21: #{tpu_custom_call.1} parent=5 // pred_check
        %p150 = pneg %p149
      $region22: #{tpu_custom_call.1} parent=5 // pred_check_branch
        %152 = sbr.rel (%p150) target = $region24
      $region23: #{tpu_custom_call.1} parent=5 // pred_region
        // Predicated region
        $region25: #{tpu_custom_call.1} parent=23 // pred_check
          %p153 = pneg %p36
        $region26: #{tpu_custom_call.1} parent=23 // pred_check_branch
          %155 = sbr.rel (%p153) target = $region28
        $region27: #{tpu_custom_call.1} parent=23 // pred_region
          %s156 = sand.u32 %s26, 1
          %s157 = scalar_lea.sflag [#allocation3], %s156
          %s158 = sand.u32 %s26, 1
          %s159 = smul.addr %s158, 128
          %s160 = scalar_lea.vmem [#allocation2], %s159
          %s161 = smul.u32 16, %s16
          %s163 = ssub.s32 2048, 2048
          %164 = vsyncadd %s157, %s163
          %s165 = smul.addr %s161, 128
          %s166 = scalar_lea.hbm %s0, %s165
          %s167 = sshll.u32 %s160, 4
          %s168 = int_to_ptr.vmem [resolvable:$true] %s167
          %173 = dma.hbm_to_vmem [thread:$0]  %s166, 2048, %s168, %s157, 128, 128, 8
        $region28: #{tpu_custom_call.1} parent=23 // pred_fallthru
          _
      $region24: #{tpu_custom_call.1} parent=5 // pred_fallthru
        _
      %p174 = scmp.le.s32.totalorder 1, %s16
      %p175 = scmp.lt.s32.totalorder %s16, 5
      %p176 = pnand %p174, %p175
      %p177 = pneg %p176
      // Predicated region
      $region29: #{tpu_custom_call.1} parent=5 // pred_check
        _
      $region30: #{tpu_custom_call.1} parent=5 // pred_check_branch
        %179 = sbr.rel (%p176) target = $region32
      $region31: #{tpu_custom_call.1} parent=5 // pred_region
        %s180 = ssub.s32 %s16, 1
        %s181 = sand.u32 %s29, 1
        %s182 = scalar_lea.sflag [#allocation3], %s181
        %s183 = sand.u32 %s29, 1
        %s184 = smul.addr %s183, 128
        %s185 = scalar_lea.vmem [#allocation2], %s184
        // Predicated region
        $region33: #{tpu_custom_call.1} parent=31 // pred_check
          %p186 = pneg %p42
        $region34: #{tpu_custom_call.1} parent=31 // pred_check_branch
          %188 = sbr.rel (%p186) target = $region36
        $region35: #{tpu_custom_call.1} parent=31 // pred_region
          %189 = dma.done %s182, 2048
        $region36: #{tpu_custom_call.1} parent=31 // pred_fallthru
          _
        // Predicated region
        $region37: #{tpu_custom_call.1} parent=31 // pred_check
          %p190 = pneg %p63
        $region38: #{tpu_custom_call.1} parent=31 // pred_check_branch
          %192 = sbr.rel (%p190) target = $region40
        $region39: #{tpu_custom_call.1} parent=31 // pred_region
          %193 = dma.done [#allocation6], 1408
        $region40: #{tpu_custom_call.1} parent=31 // pred_fallthru
          _
        // Predicated region
        $region41: #{tpu_custom_call.1} parent=31 // pred_check
          %p194 = pneg %p84
        $region42: #{tpu_custom_call.1} parent=31 // pred_check_branch
          %196 = sbr.rel (%p194) target = $region44
        $region43: #{tpu_custom_call.1} parent=31 // pred_region
          %197 = dma.done [#allocation6], 16
        $region44: #{tpu_custom_call.1} parent=31 // pred_fallthru
          _
        %s198 = sand.u32 %s29, 1
        %s199 = scalar_lea.sflag [#allocation3], %s198
        %s200 = sand.u32 %s29, 1
        %s201 = smul.addr %s200, 128
        %s202 = scalar_lea.vmem [#allocation2], %s201
        %p203 = pneg %p42
        %p204 = pneg %p39
        %p205 = pneg %p63
        %p206 = pneg %p60
        %p207 = pneg %p84
        %p208 = pneg %p81
        %p209 = pneg %p110
        %p210 = pneg %p107
        %s211 = sand.u32 %s97, 1
        %s212 = scalar_lea.sflag [#allocation4], %s211
        %s213 = sand.u32 %s97, 1
        %s214 = smul.addr %s213, 128
        %s215 = scalar_lea.vmem [#allocation8], %s214
        %s216 = smul.u32 16, %s21
        %s217 = smul.u32 16, %s21
        %v218 = vld [vmem:[%s185] sm:$0xff]
        %v219 = vld [vmem:[%s185 + $0x8] sm:$0xff]
        %v220 = vld [vmem:[%s185 + $0x10] sm:$0xff]
        %v221 = vld [vmem:[%s185 + $0x18] sm:$0xff]
        %v222 = vld [vmem:[%s185 + $0x20] sm:$0xff]
        %v223 = vld [vmem:[%s185 + $0x28] sm:$0xff]
        %v224 = vld [vmem:[%s185 + $0x30] sm:$0xff]
        %v225 = vld [vmem:[%s185 + $0x38] sm:$0xff]
        %v226 = vld [vmem:[%s185 + $0x40] sm:$0xff]
        %v227 = vld [vmem:[%s185 + $0x48] sm:$0xff]
        %v228 = vld [vmem:[%s185 + $0x50] sm:$0xff]
        %v229 = vld [vmem:[%s185 + $0x58] sm:$0xff]
        %v230 = vld [vmem:[%s185 + $0x60] sm:$0xff]
        %v231 = vld [vmem:[%s185 + $0x68] sm:$0xff]
        %v232 = vld [vmem:[%s185 + $0x70] sm:$0xff]
        %v233 = vld [vmem:[%s185 + $0x78] sm:$0xff]
        %v234 = vld [vmem:[#allocation5] sm:$0xff]
        %v235 = vld [vmem:[#allocation5 + $0x8] sm:$0xff]
        %v236 = vld [vmem:[#allocation5 + $0x10] sm:$0xff]
        %v237 = vld [vmem:[#allocation5 + $0x18] sm:$0xff]
        %v238 = vld [vmem:[#allocation5 + $0x20] sm:$0xff]
        %v239 = vld [vmem:[#allocation5 + $0x28] sm:$0xff]
        %v240 = vld [vmem:[#allocation5 + $0x30] sm:$0xff]
        %v241 = vld [vmem:[#allocation5 + $0x38] sm:$0xff]
        %v242 = vld [vmem:[#allocation5 + $0x40] sm:$0xff]
        %v243 = vld [vmem:[#allocation5 + $0x48] sm:$0xff]
        %v244 = vld [vmem:[#allocation5 + $0x50] sm:$0xff]
        %v245 = vld [vmem:[#allocation7] sm:$0x1]
        %v247 = vlaneseq
        %v248 = vshrl.u32 %v247, 7
        %v249 = vsub.s32 0, %v248
        %v250 = vrot.slane %v245, %v249
        %vm252 = vcmask 719872
        %v254 = vsel %vm252, %v218, 0
        %v257 = vsel %vm252, %v219, 0
        %v260 = vsel %vm252, %v220, 0
        %v263 = vsel %vm252, %v221, 0
        %v266 = vsel %vm252, %v222, 0
        %v269 = vsel %vm252, %v223, 0
        %v272 = vsel %vm252, %v224, 0
        %v275 = vsel %vm252, %v225, 0
        %v278 = vsel %vm252, %v226, 0
        %v281 = vsel %vm252, %v227, 0
        %v284 = vsel %vm252, %v228, 0
        %v287 = vsel %vm252, %v229, 0
        %v290 = vsel %vm252, %v230, 0
        %v293 = vsel %vm252, %v231, 0
        %v296 = vsel %vm252, %v232, 0
        %v299 = vsel %vm252, %v233, 0
        %301 = vmatprep.subr.mxu0 0.0
        %302 = vmatpush1.msra.mxu0 %v234
        %303 = vmatprep.subr.mxu0 0.0
        %304 = vmatpush1.msra.mxu0 %v235
        %305 = vmatprep.subr.mxu0 0.0
        %306 = vmatpush1.msra.mxu0 %v236
        %307 = vmatprep.subr.mxu0 0.0
        %308 = vmatpush1.msra.mxu0 %v237
        %309 = vmatprep.subr.mxu0 0.0
        %310 = vmatpush1.msra.mxu0 %v238
        %311 = vmatprep.subr.mxu0 0.0
        %312 = vmatpush1.msra.mxu0 %v239
        %313 = vmatprep.subr.mxu0 0.0
        %314 = vmatpush1.msra.mxu0 %v240
        %315 = vmatprep.subr.mxu0 0.0
        %316 = vmatpush1.msra.mxu0 %v241
        %317 = vmatprep.subr.mxu0 0.0
        %318 = vmatpush1.msra.mxu0 %v242
        %319 = vmatprep.subr.mxu0 0.0
        %320 = vmatpush1.msra.mxu0 %v243
        %321 = vmatprep.subr.mxu0 0.0
        %322 = vmatpush1.msra.mxu0 %v244
        %323 = vmatprep.subr.mxu0 0.0
        %324 = vmatpush1.msra.mxu0 0.0
        %325 = vmatprep.subr.mxu0 0.0
        %326 = vmatpush1.msra.mxu0 0.0
        %327 = vmatprep.subr.mxu0 0.0
        %328 = vmatpush1.msra.mxu0 0.0
        %329 = vmatprep.subr.mxu0 0.0
        %330 = vmatpush1.msra.mxu0 0.0
        %331 = vmatprep.subr.mxu0 0.0
        %332 = vmatpush1.msra.mxu0 0.0
        %333 = vmatprep.subr.mxu0 0.0
        %334 = vmatpush1.msra.mxu0 0.0
        %335 = vmatprep.subr.mxu0 0.0
        %336 = vmatpush1.msra.mxu0 0.0
        %337 = vmatprep.subr.mxu0 0.0
        %338 = vmatpush1.msra.mxu0 0.0
        %339 = vmatprep.subr.mxu0 0.0
        %340 = vmatpush1.msra.mxu0 0.0
        %341 = vmatprep.subr.mxu0 0.0
        %342 = vmatpush1.msra.mxu0 0.0
        %343 = vmatprep.subr.mxu0 0.0
        %344 = vmatpush1.msra.mxu0 0.0
        %345 = vmatprep.subr.mxu0 0.0
        %346 = vmatpush1.msra.mxu0 0.0
        %347 = vmatprep.subr.mxu0 0.0
        %348 = vmatpush1.msra.mxu0 0.0
        %349 = vmatprep.subr.mxu0 0.0
        %350 = vmatpush1.msra.mxu0 0.0
        %351 = vmatprep.subr.mxu0 0.0
        %352 = vmatpush1.msra.mxu0 0.0
        %353 = vmatprep.subr.mxu0 0.0
        %354 = vmatpush1.msra.mxu0 0.0
        %355 = vmatprep.subr.mxu0 0.0
        %356 = vmatpush1.msra.mxu0 0.0
        %357 = vmatprep.subr.mxu0 0.0
        %358 = vmatpush1.msra.mxu0 0.0
        %359 = vmatprep.subr.mxu0 0.0
        %360 = vmatpush1.msra.mxu0 0.0
        %361 = vmatprep.subr.mxu0 0.0
        %362 = vmatpush1.msra.mxu0 0.0
        %363 = vmatprep.subr.mxu0 0.0
        %364 = vmatpush1.msra.mxu0 0.0
        %365 = vmatprep.mubr.f32.mxu0 0.0
        %366 = vmatmul.mubr.f32.gmra.mrb[0].mxu0 %v254
        %v367 = vpop.f32.mrb[0].mxu0
        %v368 = vadd.f32 %v250, %v367
        %v369 = vpop.f32.mrb[0].mxu0
        %370 = vmatprep.mubr.f32.mxu0 0.0
        %371 = vmatmul.mubr.f32.gmra.mrb[0].mxu0 %v257
        %v372 = vpop.f32.mrb[0].mxu0
        %v373 = vadd.f32 %v250, %v372
        %v374 = vpop.f32.mrb[0].mxu0
        %375 = vmatprep.mubr.f32.mxu0 0.0
        %376 = vmatmul.mubr.f32.gmra.mrb[0].mxu0 %v260
        %v377 = vpop.f32.mrb[0].mxu0
        %v378 = vadd.f32 %v250, %v377
        %v379 = vpop.f32.mrb[0].mxu0
        %380 = vmatprep.mubr.f32.mxu0 0.0
        %381 = vmatmul.mubr.f32.gmra.mrb[0].mxu0 %v263
        %v382 = vpop.f32.mrb[0].mxu0
        %v383 = vadd.f32 %v250, %v382
        %v384 = vpop.f32.mrb[0].mxu0
        %385 = vmatprep.mubr.f32.mxu0 0.0
        %386 = vmatmul.mubr.f32.gmra.mrb[0].mxu0 %v266
        %v387 = vpop.f32.mrb[0].mxu0
        %v388 = vadd.f32 %v250, %v387
        %v389 = vpop.f32.mrb[0].mxu0
        %390 = vmatprep.mubr.f32.mxu0 0.0
        %391 = vmatmul.mubr.f32.gmra.mrb[0].mxu0 %v269
        %v392 = vpop.f32.mrb[0].mxu0
        %v393 = vadd.f32 %v250, %v392
        %v394 = vpop.f32.mrb[0].mxu0
        %395 = vmatprep.mubr.f32.mxu0 0.0
        %396 = vmatmul.mubr.f32.gmra.mrb[0].mxu0 %v272
        %v397 = vpop.f32.mrb[0].mxu0
        %v398 = vadd.f32 %v250, %v397
        %v399 = vpop.f32.mrb[0].mxu0
        %400 = vmatprep.mubr.f32.mxu0 0.0
        %401 = vmatmul.mubr.f32.gmra.mrb[0].mxu0 %v275
        %v402 = vpop.f32.mrb[0].mxu0
        %v403 = vadd.f32 %v250, %v402
        %v404 = vpop.f32.mrb[0].mxu0
        %405 = vmatprep.mubr.f32.mxu0 0.0
        %406 = vmatmul.mubr.f32.gmra.mrb[0].mxu0 %v278
        %v407 = vpop.f32.mrb[0].mxu0
        %v408 = vadd.f32 %v250, %v407
        %v409 = vpop.f32.mrb[0].mxu0
        %410 = vmatprep.mubr.f32.mxu0 0.0
        %411 = vmatmul.mubr.f32.gmra.mrb[0].mxu0 %v281
        %v412 = vpop.f32.mrb[0].mxu0
        %v413 = vadd.f32 %v250, %v412
        %v414 = vpop.f32.mrb[0].mxu0
        %415 = vmatprep.mubr.f32.mxu0 0.0
        %416 = vmatmul.mubr.f32.gmra.mrb[0].mxu0 %v284
        %v417 = vpop.f32.mrb[0].mxu0
        %v418 = vadd.f32 %v250, %v417
        %v419 = vpop.f32.mrb[0].mxu0
        %420 = vmatprep.mubr.f32.mxu0 0.0
        %421 = vmatmul.mubr.f32.gmra.mrb[0].mxu0 %v287
        %v422 = vpop.f32.mrb[0].mxu0
        %v423 = vadd.f32 %v250, %v422
        %v424 = vpop.f32.mrb[0].mxu0
        %425 = vmatprep.mubr.f32.mxu0 0.0
        %426 = vmatmul.mubr.f32.gmra.mrb[0].mxu0 %v290
        %v427 = vpop.f32.mrb[0].mxu0
        %v428 = vadd.f32 %v250, %v427
        %v429 = vpop.f32.mrb[0].mxu0
        %430 = vmatprep.mubr.f32.mxu0 0.0
        %431 = vmatmul.mubr.f32.gmra.mrb[0].mxu0 %v293
        %v432 = vpop.f32.mrb[0].mxu0
        %v433 = vadd.f32 %v250, %v432
        %v434 = vpop.f32.mrb[0].mxu0
        %435 = vmatprep.mubr.f32.mxu0 0.0
        %436 = vmatmul.mubr.f32.gmra.mrb[0].mxu0 %v296
        %v437 = vpop.f32.mrb[0].mxu0
        %v438 = vadd.f32 %v250, %v437
        %v439 = vpop.f32.mrb[0].mxu0
        %440 = vmatprep.mubr.f32.mxu0 0.0
        %441 = vmatmul.mubr.f32.gmra.mrb[0].mxu0 %v299
        %v442 = vpop.f32.mrb[0].mxu0
        %v443 = vadd.f32 %v250, %v442
        %v444 = vpop.f32.mrb[0].mxu0
        %445 = vdwg.mxu0
        %vm446 = vcmask 523264
        %447 = vst.msk [vmem:[%s215] sm:$0xff] %vm446, %v368
        %448 = vst.msk [vmem:[%s215 + $0x8] sm:$0xff] %vm446, %v373
        %449 = vst.msk [vmem:[%s215 + $0x10] sm:$0xff] %vm446, %v378
        %450 = vst.msk [vmem:[%s215 + $0x18] sm:$0xff] %vm446, %v383
        %451 = vst.msk [vmem:[%s215 + $0x20] sm:$0xff] %vm446, %v388
        %452 = vst.msk [vmem:[%s215 + $0x28] sm:$0xff] %vm446, %v393
        %453 = vst.msk [vmem:[%s215 + $0x30] sm:$0xff] %vm446, %v398
        %454 = vst.msk [vmem:[%s215 + $0x38] sm:$0xff] %vm446, %v403
        %455 = vst.msk [vmem:[%s215 + $0x40] sm:$0xff] %vm446, %v408
        %456 = vst.msk [vmem:[%s215 + $0x48] sm:$0xff] %vm446, %v413
        %457 = vst.msk [vmem:[%s215 + $0x50] sm:$0xff] %vm446, %v418
        %458 = vst.msk [vmem:[%s215 + $0x58] sm:$0xff] %vm446, %v423
        %459 = vst.msk [vmem:[%s215 + $0x60] sm:$0xff] %vm446, %v428
        %460 = vst.msk [vmem:[%s215 + $0x68] sm:$0xff] %vm446, %v433
        %461 = vst.msk [vmem:[%s215 + $0x70] sm:$0xff] %vm446, %v438
        %462 = vst.msk [vmem:[%s215 + $0x78] sm:$0xff] %vm446, %v443
        %s463 = sand.u32 %s97, 1
        %s464 = scalar_lea.sflag [#allocation4], %s463
        %s465 = sand.u32 %s97, 1
        %s466 = smul.addr %s465, 128
        %s467 = scalar_lea.vmem [#allocation8], %s466
        // Predicated region
        $region45: #{tpu_custom_call.1} parent=31 // pred_check
          %p468 = pneg %p107
        $region46: #{tpu_custom_call.1} parent=31 // pred_check_branch
          %470 = sbr.rel (%p468) target = $region48
        $region47: #{tpu_custom_call.1} parent=31 // pred_region
          %s471 = smul.u32 16, %s21
          %s473 = ssub.s32 2048, 2048
          %474 = vsyncadd %s464, %s473
          %s475 = smul.addr %s471, 128
          %s476 = scalar_lea.hbm %s3, %s475
          %s477 = sshll.u32 %s467, 4
          %s478 = int_to_ptr.vmem [resolvable:$true] %s477
          %483 = dma.vmem_to_hbm [thread:$0]  %s478, 2048, %s476, %s464, 128, 128, 8
        $region48: #{tpu_custom_call.1} parent=31 // pred_fallthru
          _
      $region32: #{tpu_custom_call.1} parent=5 // pred_fallthru
        _
      %p484 = scmp.le.s32.totalorder 2, %s16
      // Predicated region
      $region49: #{tpu_custom_call.1} parent=5 // pred_check
        %p485 = pneg %p484
      $region50: #{tpu_custom_call.1} parent=5 // pred_check_branch
        %487 = sbr.rel (%p485) target = $region52
      $region51: #{tpu_custom_call.1} parent=5 // pred_region
        %s488 = ssub.s32 %s16, 2
        // Predicated region
        $region53: #{tpu_custom_call.1} parent=51 // pred_check
          %p489 = pneg %p113
        $region54: #{tpu_custom_call.1} parent=51 // pred_check_branch
          %491 = sbr.rel (%p489) target = $region56
        $region55: #{tpu_custom_call.1} parent=51 // pred_region
          %s492 = sand.u32 %s98, 1
          %s493 = scalar_lea.sflag [#allocation4], %s492
          %s494 = sand.u32 %s98, 1
          %s495 = smul.addr %s494, 128
          %s496 = scalar_lea.vmem [#allocation8], %s495
          %497 = dma.done %s493, 2048
        $region56: #{tpu_custom_call.1} parent=51 // pred_fallthru
          _
      $region52: #{tpu_custom_call.1} parent=5 // pred_fallthru
        _
    $region6: #{tpu_custom_call.1} parent=1 // loop_footer
      %s20 = sadd.s32 1, %s16
    $region7: #{tpu_custom_call.1} parent=1 // loop_footer_branch
      %15 = sbr.rel target = $region3
    $region8: #{tpu_custom_call.1} parent=1 // loop_exit
      _
    %498 = vsyncpa [#allocation3], 1
    %s499 = scalar_lea.sflag [#allocation3], 1
    %500 = vsyncpa %s499, 1
    %501 = vsyncpa [#allocation6], 1
    %502 = vsyncpa [#allocation4], 1
    %s503 = scalar_lea.sflag [#allocation4], 1
    %504 = vsyncpa %s503, 1

</llo_original>
